<compile_context>
chip_gen: v5e
topology: v5e:2x2
jax: 0.10.0
libtpu: 0.0.40
codegen_flags: <defaults>
</compile_context>

<pallas_src>
import jax
import jax.numpy as jnp
from jax.experimental import pallas as pl
from jax.experimental.pallas import tpu as pltpu

_LANES = 128  # vreg lane width


def fix_forward_kernel(p_ref, o_ref):
    # 2*sigmoid(p) + 1  ==  tanh(p/2) + 2   (exact identity)
    # One EUP transcendental + one VALU mul + one VALU add; either form is
    # equivalent cost — the binding cost here is the custom-call/DMA overhead.
    o_ref[...] = jnp.tanh(0.5 * p_ref[...]) + 2.0


@jax.jit
def fix_gru_forward(fixpara):
    """Equivalent of FixGRUModel_M.forward(x): 2*sigmoid(fixpara) + 1.

    The PyTorch forward ignores x, so x is intentionally NOT an argument:
    this function depends only on the trainable parameter.  Compute it once
    per parameter update and reuse the result (it is constant at inference).
    """
    n = fixpara.shape[0]

    # Upcast to f32 for the EUP tanh (important on v5e: no bf16 VPU/EUP path).
    p = fixpara.astype(jnp.float32)

    # Lane-dense layout: pad the lane axis to a multiple of 128 so the kernel's
    # store is an unmasked vst.  Pad/slice are metadata-cheap XLA ops outside
    # the kernel.
    n_pad = -(-n // _LANES) * _LANES
    p2d = jnp.pad(p, (0, n_pad - n)).reshape(1, n_pad)

    out2d = pl.pallas_call(
        fix_forward_kernel,
        out_shape=jax.ShapeDtypeStruct(p2d.shape, jnp.float32),
        # Whole-array, un-gridded, un-pipelined VMEM blocks — no grid-step or
        # double-buffer overhead for a tiny elementwise op.
        in_specs=[pl.BlockSpec(memory_space=pltpu.VMEM)],
        out_specs=pl.BlockSpec(memory_space=pltpu.VMEM),
    )(p2d)

    return out2d.reshape(n_pad)[:n].astype(fixpara.dtype)


if __name__ == "__main__":
    # Module hyper-params consistent with the PyTorch code:
    #   lookAhead = 1  ->  outputDim = 2 * lookAhead = 2 (alpha_M, beta_M)
    inputDim = 4
    hiddenNum = 32
    outputDim = 2
    lookAhead = 1
    batch = 2
    seq = 8

    # Deterministic parameter init: nn.Parameter(torch.ones(outputDim))
    fixpara = jnp.ones((outputDim,), dtype=jnp.float32)

    # Example input, built only to mirror the module's call context.  It is
    # NOT passed to the jitted forward (the forward ignores it), so it never
    # triggers retraces or unused-arg transfers.
    key = jax.random.PRNGKey(0)
    x = jax.random.normal(key, (batch, seq, inputDim), dtype=jnp.float32)
    del x  # unused by the forward, by construction

    # Compute once (per-parameter-update scope) and reuse downstream.
    out = fix_gru_forward(fixpara)
    out = jax.block_until_ready(out)

    # Cross-check against the plain-JAX reference of 2*sigmoid(p)+1
    ref = 2.0 * jax.nn.sigmoid(fixpara) + 1.0
    assert out.shape == (outputDim,)
    assert out.dtype == fixpara.dtype
    assert jnp.allclose(out, ref, atol=1e-6, rtol=1e-6)

    # TODO(synk): the `loss` method (divideinverse bisection + fixginverse_M
    # custom autograd backward) is training-only and not part of the forward
    # pass; it is intentionally not ported here.
    print("KERNEL_OK")
</pallas_src>

<mosaic_0001>
module attributes {stable_mosaic.version = 11 : i64} {
  func.func @fix_forward_kernel(%arg0: memref<1x128xf32, #tpu.memory_space<vmem>>, %arg1: memref<1x128xf32, #tpu.memory_space<vmem>>) attributes {dimension_semantics = [], scalar_prefetch = 0 : i64, scratch_operands = 0 : i64, tpu.core_type = #tpu.core_type<tc>} {
    %c0 = arith.constant 0 : index
    %c0_0 = arith.constant 0 : index
    %0 = vector.load %arg0[%c0, %c0_0] : memref<1x128xf32, #tpu.memory_space<vmem>>, vector<1x128xf32>
    %cst = arith.constant 5.000000e-01 : f32
    %1 = vector.broadcast %cst : f32 to vector<1x128xf32>
    %2 = arith.mulf %1, %0 : vector<1x128xf32>
    %3 = math.tanh %2 : vector<1x128xf32>
    %cst_1 = arith.constant 2.000000e+00 : f32
    %4 = vector.broadcast %cst_1 : f32 to vector<1x128xf32>
    %5 = arith.addf %3, %4 : vector<1x128xf32>
    %c0_2 = arith.constant 0 : index
    %c0_3 = arith.constant 0 : index
    %6 = vector.load %arg1[%c0_2, %c0_3] : memref<1x128xf32, #tpu.memory_space<vmem>>, vector<1x128xf32>
    tpu.vector_store %arg1[%c0_2, %c0_3], %5 {strides = array<i32>} : memref<1x128xf32, #tpu.memory_space<vmem>>, vector<1x128xf32>,
    return
  }
}

</mosaic_0001>

<llo_original>
// kernel: fix_gru_forward.1
$region0: #{fix_gru_forward.1}
  #allocation0 [shape = 'u32[]', space=smem, size = 0x4, offset = 0x4, fixed_abs, tag = 'smem constant byte address 0x4 - core index']
  #allocation1 [shape = 'u32[72,128]{1,0:T(1,128)}', space=vmem, size = 0x9000, scoped, tag = 'internal scratch']
  %s0 = inlined_call_operand.vmem [shape: f32[1,128], index: 0, kind: input, shape index: {}]
  %s1 = inlined_call_operand.vmem [shape: f32[1,128], index: 1, kind: output, shape index: {}]
  %s2 = sld [smem:[#allocation0]]
  $region14: #{fix_gru_forward.1} parent=0
    _
  %s4 = ssub.s32 1, %s2
  %s5 = scalar_select 0, %s4, %s2
  // Predicated region
  $region2: #{fix_gru_forward.1} parent=0 // pred_check
    _
  $region3: #{fix_gru_forward.1} parent=0 // pred_check_branch
    %7 = sbr.rel (0) target = $region5
  $region4: #{fix_gru_forward.1} parent=0 // pred_region
    _
  $region5: #{fix_gru_forward.1} parent=0 // pred_fallthru
    _
  %v8 = vld [vmem:[%s0] sm:$0x1]
  %v9 = vmul.f32 %v8, 0.5
  %v10 = vtanh.pop %v9
  %v11 = vadd.f32 %v10, 2.0
  %12 = vst [vmem:[%s1] sm:$0x1] %v11
  // Predicated region
  $region6: #{fix_gru_forward.1} parent=0 // pred_check
    _
  $region7: #{fix_gru_forward.1} parent=0 // pred_check_branch
    %14 = sbr.rel (0) target = $region9
  $region8: #{fix_gru_forward.1} parent=0 // pred_region
    _
  $region9: #{fix_gru_forward.1} parent=0 // pred_fallthru
    _
  // Predicated region
  $region10: #{fix_gru_forward.1} parent=0 // pred_check
    _
  $region11: #{fix_gru_forward.1} parent=0 // pred_check_branch
    %16 = sbr.rel (0) target = $region13
  $region12: #{fix_gru_forward.1} parent=0 // pred_region
    _
  $region13: #{fix_gru_forward.1} parent=0 // pred_fallthru
    _

</llo_original>
